<compile_context>
chip_gen: v5e
topology: v5e:2x2
jax: 0.10.0
libtpu: 0.0.40
codegen_flags: <defaults>
</compile_context>

<pallas_src>
import functools

import jax
import jax.numpy as jnp
from jax import lax
from jax.experimental import pallas as pl
from jax.experimental.pallas import tpu as pltpu


def _discriminator_kernel(xc_ref, lane_ref, p_ref, out_ref, *,
                          seq_len, batch, hidden, lane_dim):
    H, L, B = hidden, lane_dim, batch

    # Static slices of the packed parameter slab (prologue only — off the serial chain).
    w_ih = p_ref[pl.ds(0, H), :]                     # (H, 4H)   [i|f|o|g], i/f/o * 0.5
    w_hh = p_ref[pl.ds(H, H), :]                     # (H, 4H)
    b_g = p_ref[pl.ds(2 * H, 1), :]                  # (1, 4H)   b_ih + b_hh, same layout
    misc = p_ref[pl.ds(2 * H + 1, 1), :]             # (1, 4H)   packed small params
    b_emb = misc[:, 0:H]                             # (1, H)
    wd1 = misc[:, H:2 * H]                           # (1, H)
    wd2 = misc[:, 2 * H:2 * H + L]                   # (1, L)
    b_d = misc[:, 2 * H + L:2 * H + L + 1]           # (1, 1)
    w_cat = p_ref[pl.ds(2 * H + 8, 4), :][:, 0:H]    # (4, H)    [[(Wa+Wb)^T]; [-Wb^T]]

    xc = xc_ref[...]                                 # (S*B, 4) = [x | cl]

    # pos_emb (Dropout p=0 -> identity), one matmul for all S*B rows.
    emb = jnp.maximum(
        jnp.dot(xc, w_cat, preferred_element_type=jnp.float32) + b_emb, 0.0)     # (S*B, H)

    # Input-side gate projection for every timestep, biases folded in.
    gates_in = jnp.dot(emb, w_ih, preferred_element_type=jnp.float32) + b_g      # (S*B, 4H)

    h = jnp.zeros((B, H), jnp.float32)
    c = jnp.zeros((B, H), jnp.float32)

    # Static unroll (S=8): only the recurrent matmul + nonlinearities remain per step.
    for t in range(seq_len):
        g_t = (gates_in[t * B:(t + 1) * B, :]
               + jnp.dot(h, w_hh, preferred_element_type=jnp.float32))           # (B, 4H)
        tg = jnp.tanh(g_t)                           # single EUP launch for all 4 gates
        ifo = 0.5 * tg[:, :3 * H] + 0.5              # sigmoid(z) = 0.5*tanh(z/2) + 0.5
        i_g = ifo[:, :H]
        f_g = ifo[:, H:2 * H]
        o_g = ifo[:, 2 * H:]
        c = f_g * c + i_g * tg[:, 3 * H:]
        h = o_g * jnp.tanh(c)

    # discriminator Linear(H+L -> 1): N=1, so VPU multiply + lane reduce (no MXU tail).
    out_ref[...] = (jnp.sum(h * wd1, axis=-1, keepdims=True)
                    + jnp.sum(lane_ref[...] * wd2, axis=-1, keepdims=True)
                    + b_d)


@jax.jit
def discriminator_forward(future_traj, corr_lane_pos, lane_context, param_slab):
    """future_traj, corr_lane_pos: (S, B, 2); lane_context: (B, L) -> (B, 1)."""
    S, B, _ = future_traj.shape
    L = lane_context.shape[1]
    H = param_slab.shape[1] // 4
    B_pad = max(8, ((B + 7) // 8) * 8)   # f32 sublane tile -> clean (8,128) per-step slabs

    # Pure layout plumbing: concat [x | cl] (the -Wb negation is folded into the slab),
    # pad batch to the sublane tile, flatten time-major.
    xc = jnp.concatenate([future_traj, corr_lane_pos], axis=-1)       # (S, B, 4)
    xc = jnp.pad(xc, ((0, 0), (0, B_pad - B), (0, 0)))                # (S, B_pad, 4)
    xc_flat = xc.reshape(S * B_pad, 4)
    lane_pad = jnp.pad(lane_context, ((0, B_pad - B), (0, 0)))        # (B_pad, L)

    vmem = pl.BlockSpec(memory_space=pltpu.MemorySpace.VMEM)
    kernel = functools.partial(_discriminator_kernel, seq_len=S, batch=B_pad,
                               hidden=H, lane_dim=L)
    out = pl.pallas_call(
        kernel,
        out_shape=jax.ShapeDtypeStruct((B_pad, 1), jnp.float32),
        in_specs=[vmem, vmem, vmem],
        out_specs=vmem,
    )(xc_flat, lane_pad, param_slab)
    return out[:B]


def make_raw_params(key, H, L):
    """Raw torch-shaped parameters (Linear: (out, in); LSTM gate order [i, f, g, o])."""
    ks = jax.random.split(key, 8)
    s = 0.1
    return {
        "w_emb": jax.random.normal(ks[0], (H, 4), jnp.float32) * s,
        "b_emb": jax.random.normal(ks[1], (H,), jnp.float32) * s,
        "w_ih": jax.random.normal(ks[2], (4 * H, H), jnp.float32) * s,
        "w_hh": jax.random.normal(ks[3], (4 * H, H), jnp.float32) * s,
        "b_ih": jax.random.normal(ks[4], (4 * H,), jnp.float32) * s,
        "b_hh": jax.random.normal(ks[5], (4 * H,), jnp.float32) * s,
        "w_d": jax.random.normal(ks[6], (1, H + L), jnp.float32) * s,
        "b_d": jax.random.normal(ks[7], (1,), jnp.float32) * s,
    }


def prepare_kernel_params(raw, H, L):
    """Pack all params into one (2H+16, 4H) f32 slab (gate order [i,f,o,g], i/f/o *0.5)."""
    fourH = 4 * H
    assert 2 * H + L + 1 <= fourH, "misc-row packing requires L <= 2H - 1"

    def reorder(wt):   # columns [i | f | g | o] -> [i | f | o | g]
        return jnp.concatenate([wt[:, :2 * H], wt[:, 3 * H:], wt[:, 2 * H:3 * H]], axis=1)

    def prescale(wt):  # scale i/f/o columns by 0.5 (single-tanh gate trick)
        return jnp.concatenate([0.5 * wt[:, :3 * H], wt[:, 3 * H:]], axis=1)

    w_ih_t = prescale(reorder(jnp.transpose(raw["w_ih"])))                         # (H, 4H)
    w_hh_t = prescale(reorder(jnp.transpose(raw["w_hh"])))                         # (H, 4H)
    b_g = prescale(reorder((raw["b_ih"] + raw["b_hh"]).reshape(1, fourH)))         # (1, 4H)

    # pos_emb: relu([x | x-cl] @ W^T + b) == relu([x | cl] @ [[(Wa+Wb)^T]; [-Wb^T]] + b)
    w_a = raw["w_emb"][:, :2]
    w_b = raw["w_emb"][:, 2:]
    w_cat = jnp.concatenate([jnp.transpose(w_a + w_b), -jnp.transpose(w_b)], axis=0)  # (4, H)

    rows = 2 * H + 16
    slab = jnp.zeros((rows, fourH), jnp.float32)
    slab = slab.at[0:H, :].set(w_ih_t)
    slab = slab.at[H:2 * H, :].set(w_hh_t)
    slab = slab.at[2 * H, :].set(b_g[0])
    misc = jnp.zeros((fourH,), jnp.float32)
    misc = misc.at[0:H].set(raw["b_emb"])
    misc = misc.at[H:2 * H].set(raw["w_d"][0, :H])
    misc = misc.at[2 * H:2 * H + L].set(raw["w_d"][0, H:])
    misc = misc.at[2 * H + L].set(raw["b_d"][0])
    slab = slab.at[2 * H + 1, :].set(misc)
    slab = slab.at[2 * H + 8:2 * H + 12, :H].set(w_cat)
    return slab


def reference_forward(future_traj, corr_lane_pos, lane_context, raw):
    """Pure-JAX reference mirroring the PyTorch module (built from raw params)."""
    S, B, _ = future_traj.shape
    H = raw["b_emb"].shape[0]
    diff = future_traj - corr_lane_pos
    cat = jnp.concatenate([future_traj, diff], axis=2)                  # (S, B, 4)
    emb = jnp.maximum(cat @ raw["w_emb"].T + raw["b_emb"], 0.0)         # (S, B, H)

    def cell(carry, x_t):
        h, c = carry
        g = x_t @ raw["w_ih"].T + h @ raw["w_hh"].T + raw["b_ih"] + raw["b_hh"]
        i = jax.nn.sigmoid(g[:, :H])
        f = jax.nn.sigmoid(g[:, H:2 * H])
        gg = jnp.tanh(g[:, 2 * H:3 * H])
        o = jax.nn.sigmoid(g[:, 3 * H:])
        c = f * c + i * gg
        h = o * jnp.tanh(c)
        return (h, c), None

    (h, _), _ = lax.scan(cell, (jnp.zeros((B, H)), jnp.zeros((B, H))), emb)
    # Fixed: discriminator sees cat(h, lane_context), matching the PyTorch module.
    return jnp.concatenate([h, lane_context], axis=1) @ raw["w_d"].T + raw["b_d"]


if __name__ == "__main__":
    # args: past_horizon_seconds=2, future_horizon_seconds=2, target_sample_period=2
    #       traj_enc_h_dim=32, lane_feat_dim=32  ->  seq_len = 8
    S, B, H, L = 8, 2, 32, 32
    key = jax.random.PRNGKey(0)
    k1, k2, k3, kp = jax.random.split(key, 4)
    future_traj = jax.random.normal(k1, (S, B, 2), jnp.float32)
    corr_lane_pos = jax.random.normal(k2, (S, B, 2), jnp.float32)
    lane_context = jax.random.normal(k3, (B, L), jnp.float32)

    raw = make_raw_params(kp, H, L)
    param_slab = prepare_kernel_params(raw, H, L)

    out = discriminator_forward(future_traj, corr_lane_pos, lane_context, param_slab)
    out = jax.block_until_ready(out)

    ref = reference_forward(future_traj, corr_lane_pos, lane_context, raw)
    assert out.shape == (B, 1)
    assert jnp.allclose(out, ref, atol=1e-4, rtol=1e-4), (out, ref)
    print("KERNEL_OK")
</pallas_src>

<mosaic_0001>
module attributes {stable_mosaic.version = 11 : i64} {
  func.func @_discriminator_kernel(%arg0: memref<64x4xf32, #tpu.memory_space<vmem>>, %arg1: memref<8x32xf32, #tpu.memory_space<vmem>>, %arg2: memref<80x128xf32, #tpu.memory_space<vmem>>, %arg3: memref<8x1xf32, #tpu.memory_space<vmem>>) attributes {dimension_semantics = [], scalar_prefetch = 0 : i64, scratch_operands = 0 : i64, tpu.core_type = #tpu.core_type<tc>} {
    %c0 = arith.constant 0 : index
    %c0_0 = arith.constant 0 : index
    %0 = vector.load %arg2[%c0, %c0_0] : memref<80x128xf32, #tpu.memory_space<vmem>>, vector<32x128xf32>
    %c32 = arith.constant 32 : index
    %c0_1 = arith.constant 0 : index
    %1 = vector.load %arg2[%c32, %c0_1] : memref<80x128xf32, #tpu.memory_space<vmem>>, vector<32x128xf32>
    %c64 = arith.constant 64 : index
    %c0_2 = arith.constant 0 : index
    %2 = vector.load %arg2[%c64, %c0_2] : memref<80x128xf32, #tpu.memory_space<vmem>>, vector<1x128xf32>
    %c65 = arith.constant 65 : index
    %c0_3 = arith.constant 0 : index
    %3 = vector.load %arg2[%c65, %c0_3] : memref<80x128xf32, #tpu.memory_space<vmem>>, vector<1x128xf32>
    %4 = vector.extract_strided_slice %3 {offsets = [0, 0], sizes = [1, 32], strides = [1, 1]} : vector<1x128xf32> to vector<1x32xf32>
    %5 = vector.extract_strided_slice %3 {offsets = [0, 32], sizes = [1, 32], strides = [1, 1]} : vector<1x128xf32> to vector<1x32xf32>
    %6 = vector.extract_strided_slice %3 {offsets = [0, 64], sizes = [1, 32], strides = [1, 1]} : vector<1x128xf32> to vector<1x32xf32>
    %7 = vector.extract_strided_slice %3 {offsets = [0, 96], sizes = [1, 1], strides = [1, 1]} : vector<1x128xf32> to vector<1x1xf32>
    %c72 = arith.constant 72 : index
    %c0_4 = arith.constant 0 : index
    %8 = vector.load %arg2[%c72, %c0_4] : memref<80x128xf32, #tpu.memory_space<vmem>>, vector<4x128xf32>
    %9 = vector.extract_strided_slice %8 {offsets = [0, 0], sizes = [4, 32], strides = [1, 1]} : vector<4x128xf32> to vector<4x32xf32>
    %c0_5 = arith.constant 0 : index
    %c0_6 = arith.constant 0 : index
    %10 = vector.load %arg0[%c0_5, %c0_6] : memref<64x4xf32, #tpu.memory_space<vmem>>, vector<64x4xf32>
    %cst = arith.constant dense<0.000000e+00> : vector<64x32xf32>
    %11 = tpu.matmul %10, %9, %cst {dimension_numbers = #tpu.dot_dimension_numbers<[1], [0], [0], [1], [0, 0, 1, 1], [], []>} : vector<64x4xf32>, vector<4x32xf32>, vector<64x32xf32> -> vector<64x32xf32>
    %12 = vector.broadcast %4 : vector<1x32xf32> to vector<64x32xf32>
    %13 = arith.addf %11, %12 : vector<64x32xf32>
    %cst_7 = arith.constant 0.000000e+00 : f32
    %14 = vector.broadcast %cst_7 : f32 to vector<64x32xf32>
    %15 = arith.maximumf %13, %14 : vector<64x32xf32>
    %cst_8 = arith.constant dense<0.000000e+00> : vector<64x128xf32>
    %16 = tpu.matmul %15, %0, %cst_8 {dimension_numbers = #tpu.dot_dimension_numbers<[1], [0], [0], [1], [0, 0, 1, 1], [], []>} : vector<64x32xf32>, vector<32x128xf32>, vector<64x128xf32> -> vector<64x128xf32>
    %17 = vector.broadcast %2 : vector<1x128xf32> to vector<64x128xf32>
    %18 = arith.addf %16, %17 : vector<64x128xf32>
    %cst_9 = arith.constant 0.000000e+00 : f32
    %19 = vector.broadcast %cst_9 : f32 to vector<8x32xf32>
    %cst_10 = arith.constant 0.000000e+00 : f32
    %20 = vector.broadcast %cst_10 : f32 to vector<8x32xf32>
    %21 = vector.extract_strided_slice %18 {offsets = [0, 0], sizes = [8, 128], strides = [1, 1]} : vector<64x128xf32> to vector<8x128xf32>
    %cst_11 = arith.constant dense<0.000000e+00> : vector<8x128xf32>
    %22 = tpu.matmul %19, %1, %cst_11 {dimension_numbers = #tpu.dot_dimension_numbers<[1], [0], [0], [1], [0, 0, 1, 1], [], []>} : vector<8x32xf32>, vector<32x128xf32>, vector<8x128xf32> -> vector<8x128xf32>
    %23 = arith.addf %21, %22 : vector<8x128xf32>
    %24 = math.tanh %23 : vector<8x128xf32>
    %25 = vector.extract_strided_slice %24 {offsets = [0, 0], sizes = [8, 96], strides = [1, 1]} : vector<8x128xf32> to vector<8x96xf32>
    %cst_12 = arith.constant 5.000000e-01 : f32
    %26 = vector.broadcast %cst_12 : f32 to vector<8x96xf32>
    %27 = arith.mulf %26, %25 : vector<8x96xf32>
    %cst_13 = arith.constant 5.000000e-01 : f32
    %28 = vector.broadcast %cst_13 : f32 to vector<8x96xf32>
    %29 = arith.addf %27, %28 : vector<8x96xf32>
    %30 = vector.extract_strided_slice %29 {offsets = [0, 0], sizes = [8, 32], strides = [1, 1]} : vector<8x96xf32> to vector<8x32xf32>
    %31 = vector.extract_strided_slice %29 {offsets = [0, 32], sizes = [8, 32], strides = [1, 1]} : vector<8x96xf32> to vector<8x32xf32>
    %32 = vector.extract_strided_slice %29 {offsets = [0, 64], sizes = [8, 32], strides = [1, 1]} : vector<8x96xf32> to vector<8x32xf32>
    %33 = arith.mulf %31, %20 : vector<8x32xf32>
    %34 = vector.extract_strided_slice %24 {offsets = [0, 96], sizes = [8, 32], strides = [1, 1]} : vector<8x128xf32> to vector<8x32xf32>
    %35 = arith.mulf %30, %34 : vector<8x32xf32>
    %36 = arith.addf %33, %35 : vector<8x32xf32>
    %37 = math.tanh %36 : vector<8x32xf32>
    %38 = arith.mulf %32, %37 : vector<8x32xf32>
    %39 = vector.extract_strided_slice %18 {offsets = [8, 0], sizes = [8, 128], strides = [1, 1]} : vector<64x128xf32> to vector<8x128xf32>
    %cst_14 = arith.constant dense<0.000000e+00> : vector<8x128xf32>
    %40 = tpu.matmul %38, %1, %cst_14 {dimension_numbers = #tpu.dot_dimension_numbers<[1], [0], [0], [1], [0, 0, 1, 1], [], []>} : vector<8x32xf32>, vector<32x128xf32>, vector<8x128xf32> -> vector<8x128xf32>
    %41 = arith.addf %39, %40 : vector<8x128xf32>
    %42 = math.tanh %41 : vector<8x128xf32>
    %43 = vector.extract_strided_slice %42 {offsets = [0, 0], sizes = [8, 96], strides = [1, 1]} : vector<8x128xf32> to vector<8x96xf32>
    %cst_15 = arith.constant 5.000000e-01 : f32
    %44 = vector.broadcast %cst_15 : f32 to vector<8x96xf32>
    %45 = arith.mulf %44, %43 : vector<8x96xf32>
    %cst_16 = arith.constant 5.000000e-01 : f32
    %46 = vector.broadcast %cst_16 : f32 to vector<8x96xf32>
    %47 = arith.addf %45, %46 : vector<8x96xf32>
    %48 = vector.extract_strided_slice %47 {offsets = [0, 0], sizes = [8, 32], strides = [1, 1]} : vector<8x96xf32> to vector<8x32xf32>
    %49 = vector.extract_strided_slice %47 {offsets = [0, 32], sizes = [8, 32], strides = [1, 1]} : vector<8x96xf32> to vector<8x32xf32>
    %50 = vector.extract_strided_slice %47 {offsets = [0, 64], sizes = [8, 32], strides = [1, 1]} : vector<8x96xf32> to vector<8x32xf32>
    %51 = arith.mulf %49, %36 : vector<8x32xf32>
    %52 = vector.extract_strided_slice %42 {offsets = [0, 96], sizes = [8, 32], strides = [1, 1]} : vector<8x128xf32> to vector<8x32xf32>
    %53 = arith.mulf %48, %52 : vector<8x32xf32>
    %54 = arith.addf %51, %53 : vector<8x32xf32>
    %55 = math.tanh %54 : vector<8x32xf32>
    %56 = arith.mulf %50, %55 : vector<8x32xf32>
    %57 = vector.extract_strided_slice %18 {offsets = [16, 0], sizes = [8, 128], strides = [1, 1]} : vector<64x128xf32> to vector<8x128xf32>
    %cst_17 = arith.constant dense<0.000000e+00> : vector<8x128xf32>
    %58 = tpu.matmul %56, %1, %cst_17 {dimension_numbers = #tpu.dot_dimension_numbers<[1], [0], [0], [1], [0, 0, 1, 1], [], []>} : vector<8x32xf32>, vector<32x128xf32>, vector<8x128xf32> -> vector<8x128xf32>
    %59 = arith.addf %57, %58 : vector<8x128xf32>
    %60 = math.tanh %59 : vector<8x128xf32>
    %61 = vector.extract_strided_slice %60 {offsets = [0, 0], sizes = [8, 96], strides = [1, 1]} : vector<8x128xf32> to vector<8x96xf32>
    %cst_18 = arith.constant 5.000000e-01 : f32
    %62 = vector.broadcast %cst_18 : f32 to vector<8x96xf32>
    %63 = arith.mulf %62, %61 : vector<8x96xf32>
    %cst_19 = arith.constant 5.000000e-01 : f32
    %64 = vector.broadcast %cst_19 : f32 to vector<8x96xf32>
    %65 = arith.addf %63, %64 : vector<8x96xf32>
    %66 = vector.extract_strided_slice %65 {offsets = [0, 0], sizes = [8, 32], strides = [1, 1]} : vector<8x96xf32> to vector<8x32xf32>
    %67 = vector.extract_strided_slice %65 {offsets = [0, 32], sizes = [8, 32], strides = [1, 1]} : vector<8x96xf32> to vector<8x32xf32>
    %68 = vector.extract_strided_slice %65 {offsets = [0, 64], sizes = [8, 32], strides = [1, 1]} : vector<8x96xf32> to vector<8x32xf32>
    %69 = arith.mulf %67, %54 : vector<8x32xf32>
    %70 = vector.extract_strided_slice %60 {offsets = [0, 96], sizes = [8, 32], strides = [1, 1]} : vector<8x128xf32> to vector<8x32xf32>
    %71 = arith.mulf %66, %70 : vector<8x32xf32>
    %72 = arith.addf %69, %71 : vector<8x32xf32>
    %73 = math.tanh %72 : vector<8x32xf32>
    %74 = arith.mulf %68, %73 : vector<8x32xf32>
    %75 = vector.extract_strided_slice %18 {offsets = [24, 0], sizes = [8, 128], strides = [1, 1]} : vector<64x128xf32> to vector<8x128xf32>
    %cst_20 = arith.constant dense<0.000000e+00> : vector<8x128xf32>
    %76 = tpu.matmul %74, %1, %cst_20 {dimension_numbers = #tpu.dot_dimension_numbers<[1], [0], [0], [1], [0, 0, 1, 1], [], []>} : vector<8x32xf32>, vector<32x128xf32>, vector<8x128xf32> -> vector<8x128xf32>
    %77 = arith.addf %75, %76 : vector<8x128xf32>
    %78 = math.tanh %77 : vector<8x128xf32>
    %79 = vector.extract_strided_slice %78 {offsets = [0, 0], sizes = [8, 96], strides = [1, 1]} : vector<8x128xf32> to vector<8x96xf32>
    %cst_21 = arith.constant 5.000000e-01 : f32
    %80 = vector.broadcast %cst_21 : f32 to vector<8x96xf32>
    %81 = arith.mulf %80, %79 : vector<8x96xf32>
    %cst_22 = arith.constant 5.000000e-01 : f32
    %82 = vector.broadcast %cst_22 : f32 to vector<8x96xf32>
    %83 = arith.addf %81, %82 : vector<8x96xf32>
    %84 = vector.extract_strided_slice %83 {offsets = [0, 0], sizes = [8, 32], strides = [1, 1]} : vector<8x96xf32> to vector<8x32xf32>
    %85 = vector.extract_strided_slice %83 {offsets = [0, 32], sizes = [8, 32], strides = [1, 1]} : vector<8x96xf32> to vector<8x32xf32>
    %86 = vector.extract_strided_slice %83 {offsets = [0, 64], sizes = [8, 32], strides = [1, 1]} : vector<8x96xf32> to vector<8x32xf32>
    %87 = arith.mulf %85, %72 : vector<8x32xf32>
    %88 = vector.extract_strided_slice %78 {offsets = [0, 96], sizes = [8, 32], strides = [1, 1]} : vector<8x128xf32> to vector<8x32xf32>
    %89 = arith.mulf %84, %88 : vector<8x32xf32>
    %90 = arith.addf %87, %89 : vector<8x32xf32>
    %91 = math.tanh %90 : vector<8x32xf32>
    %92 = arith.mulf %86, %91 : vector<8x32xf32>
    %93 = vector.extract_strided_slice %18 {offsets = [32, 0], sizes = [8, 128], strides = [1, 1]} : vector<64x128xf32> to vector<8x128xf32>
    %cst_23 = arith.constant dense<0.000000e+00> : vector<8x128xf32>
    %94 = tpu.matmul %92, %1, %cst_23 {dimension_numbers = #tpu.dot_dimension_numbers<[1], [0], [0], [1], [0, 0, 1, 1], [], []>} : vector<8x32xf32>, vector<32x128xf32>, vector<8x128xf32> -> vector<8x128xf32>
    %95 = arith.addf %93, %94 : vector<8x128xf32>
    %96 = math.tanh %95 : vector<8x128xf32>
    %97 = vector.extract_strided_slice %96 {offsets = [0, 0], sizes = [8, 96], strides = [1, 1]} : vector<8x128xf32> to vector<8x96xf32>
    %cst_24 = arith.constant 5.000000e-01 : f32
    %98 = vector.broadcast %cst_24 : f32 to vector<8x96xf32>
    %99 = arith.mulf %98, %97 : vector<8x96xf32>
    %cst_25 = arith.constant 5.000000e-01 : f32
    %100 = vector.broadcast %cst_25 : f32 to vector<8x96xf32>
    %101 = arith.addf %99, %100 : vector<8x96xf32>
    %102 = vector.extract_strided_slice %101 {offsets = [0, 0], sizes = [8, 32], strides = [1, 1]} : vector<8x96xf32> to vector<8x32xf32>
    %103 = vector.extract_strided_slice %101 {offsets = [0, 32], sizes = [8, 32], strides = [1, 1]} : vector<8x96xf32> to vector<8x32xf32>
    %104 = vector.extract_strided_slice %101 {offsets = [0, 64], sizes = [8, 32], strides = [1, 1]} : vector<8x96xf32> to vector<8x32xf32>
    %105 = arith.mulf %103, %90 : vector<8x32xf32>
    %106 = vector.extract_strided_slice %96 {offsets = [0, 96], sizes = [8, 32], strides = [1, 1]} : vector<8x128xf32> to vector<8x32xf32>
    %107 = arith.mulf %102, %106 : vector<8x32xf32>
    %108 = arith.addf %105, %107 : vector<8x32xf32>
    %109 = math.tanh %108 : vector<8x32xf32>
    %110 = arith.mulf %104, %109 : vector<8x32xf32>
    %111 = vector.extract_strided_slice %18 {offsets = [40, 0], sizes = [8, 128], strides = [1, 1]} : vector<64x128xf32> to vector<8x128xf32>
    %cst_26 = arith.constant dense<0.000000e+00> : vector<8x128xf32>
    %112 = tpu.matmul %110, %1, %cst_26 {dimension_numbers = #tpu.dot_dimension_numbers<[1], [0], [0], [1], [0, 0, 1, 1], [], []>} : vector<8x32xf32>, vector<32x128xf32>, vector<8x128xf32> -> vector<8x128xf32>
    %113 = arith.addf %111, %112 : vector<8x128xf32>
    %114 = math.tanh %113 : vector<8x128xf32>
    %115 = vector.extract_strided_slice %114 {offsets = [0, 0], sizes = [8, 96], strides = [1, 1]} : vector<8x128xf32> to vector<8x96xf32>
    %cst_27 = arith.constant 5.000000e-01 : f32
    %116 = vector.broadcast %cst_27 : f32 to vector<8x96xf32>
    %117 = arith.mulf %116, %115 : vector<8x96xf32>
    %cst_28 = arith.constant 5.000000e-01 : f32
    %118 = vector.broadcast %cst_28 : f32 to vector<8x96xf32>
    %119 = arith.addf %117, %118 : vector<8x96xf32>
    %120 = vector.extract_strided_slice %119 {offsets = [0, 0], sizes = [8, 32], strides = [1, 1]} : vector<8x96xf32> to vector<8x32xf32>
    %121 = vector.extract_strided_slice %119 {offsets = [0, 32], sizes = [8, 32], strides = [1, 1]} : vector<8x96xf32> to vector<8x32xf32>
    %122 = vector.extract_strided_slice %119 {offsets = [0, 64], sizes = [8, 32], strides = [1, 1]} : vector<8x96xf32> to vector<8x32xf32>
    %123 = arith.mulf %121, %108 : vector<8x32xf32>
    %124 = vector.extract_strided_slice %114 {offsets = [0, 96], sizes = [8, 32], strides = [1, 1]} : vector<8x128xf32> to vector<8x32xf32>
    %125 = arith.mulf %120, %124 : vector<8x32xf32>
    %126 = arith.addf %123, %125 : vector<8x32xf32>
    %127 = math.tanh %126 : vector<8x32xf32>
    %128 = arith.mulf %122, %127 : vector<8x32xf32>
    %129 = vector.extract_strided_slice %18 {offsets = [48, 0], sizes = [8, 128], strides = [1, 1]} : vector<64x128xf32> to vector<8x128xf32>
    %cst_29 = arith.constant dense<0.000000e+00> : vector<8x128xf32>
    %130 = tpu.matmul %128, %1, %cst_29 {dimension_numbers = #tpu.dot_dimension_numbers<[1], [0], [0], [1], [0, 0, 1, 1], [], []>} : vector<8x32xf32>, vector<32x128xf32>, vector<8x128xf32> -> vector<8x128xf32>
    %131 = arith.addf %129, %130 : vector<8x128xf32>
    %132 = math.tanh %131 : vector<8x128xf32>
    %133 = vector.extract_strided_slice %132 {offsets = [0, 0], sizes = [8, 96], strides = [1, 1]} : vector<8x128xf32> to vector<8x96xf32>
    %cst_30 = arith.constant 5.000000e-01 : f32
    %134 = vector.broadcast %cst_30 : f32 to vector<8x96xf32>
    %135 = arith.mulf %134, %133 : vector<8x96xf32>
    %cst_31 = arith.constant 5.000000e-01 : f32
    %136 = vector.broadcast %cst_31 : f32 to vector<8x96xf32>
    %137 = arith.addf %135, %136 : vector<8x96xf32>
    %138 = vector.extract_strided_slice %137 {offsets = [0, 0], sizes = [8, 32], strides = [1, 1]} : vector<8x96xf32> to vector<8x32xf32>
    %139 = vector.extract_strided_slice %137 {offsets = [0, 32], sizes = [8, 32], strides = [1, 1]} : vector<8x96xf32> to vector<8x32xf32>
    %140 = vector.extract_strided_slice %137 {offsets = [0, 64], sizes = [8, 32], strides = [1, 1]} : vector<8x96xf32> to vector<8x32xf32>
    %141 = arith.mulf %139, %126 : vector<8x32xf32>
    %142 = vector.extract_strided_slice %132 {offsets = [0, 96], sizes = [8, 32], strides = [1, 1]} : vector<8x128xf32> to vector<8x32xf32>
    %143 = arith.mulf %138, %142 : vector<8x32xf32>
    %144 = arith.addf %141, %143 : vector<8x32xf32>
    %145 = math.tanh %144 : vector<8x32xf32>
    %146 = arith.mulf %140, %145 : vector<8x32xf32>
    %147 = vector.extract_strided_slice %18 {offsets = [56, 0], sizes = [8, 128], strides = [1, 1]} : vector<64x128xf32> to vector<8x128xf32>
    %cst_32 = arith.constant dense<0.000000e+00> : vector<8x128xf32>
    %148 = tpu.matmul %146, %1, %cst_32 {dimension_numbers = #tpu.dot_dimension_numbers<[1], [0], [0], [1], [0, 0, 1, 1], [], []>} : vector<8x32xf32>, vector<32x128xf32>, vector<8x128xf32> -> vector<8x128xf32>
    %149 = arith.addf %147, %148 : vector<8x128xf32>
    %150 = math.tanh %149 : vector<8x128xf32>
    %151 = vector.extract_strided_slice %150 {offsets = [0, 0], sizes = [8, 96], strides = [1, 1]} : vector<8x128xf32> to vector<8x96xf32>
    %cst_33 = arith.constant 5.000000e-01 : f32
    %152 = vector.broadcast %cst_33 : f32 to vector<8x96xf32>
    %153 = arith.mulf %152, %151 : vector<8x96xf32>
    %cst_34 = arith.constant 5.000000e-01 : f32
    %154 = vector.broadcast %cst_34 : f32 to vector<8x96xf32>
    %155 = arith.addf %153, %154 : vector<8x96xf32>
    %156 = vector.extract_strided_slice %155 {offsets = [0, 0], sizes = [8, 32], strides = [1, 1]} : vector<8x96xf32> to vector<8x32xf32>
    %157 = vector.extract_strided_slice %155 {offsets = [0, 32], sizes = [8, 32], strides = [1, 1]} : vector<8x96xf32> to vector<8x32xf32>
    %158 = vector.extract_strided_slice %155 {offsets = [0, 64], sizes = [8, 32], strides = [1, 1]} : vector<8x96xf32> to vector<8x32xf32>
    %159 = arith.mulf %157, %144 : vector<8x32xf32>
    %160 = vector.extract_strided_slice %150 {offsets = [0, 96], sizes = [8, 32], strides = [1, 1]} : vector<8x128xf32> to vector<8x32xf32>
    %161 = arith.mulf %156, %160 : vector<8x32xf32>
    %162 = arith.addf %159, %161 : vector<8x32xf32>
    %163 = math.tanh %162 : vector<8x32xf32>
    %164 = arith.mulf %158, %163 : vector<8x32xf32>
    %165 = vector.broadcast %5 : vector<1x32xf32> to vector<8x32xf32>
    %166 = arith.mulf %164, %165 : vector<8x32xf32>
    %cst_35 = arith.constant dense<0.000000e+00> : vector<8xf32>
    %167 = vector.multi_reduction <add>, %166, %cst_35 [1] : vector<8x32xf32> to vector<8xf32>
    %168 = vector.shape_cast %167 : vector<8xf32> to vector<8x1xf32>
    %c0_36 = arith.constant 0 : index
    %c0_37 = arith.constant 0 : index
    %169 = vector.load %arg1[%c0_36, %c0_37] : memref<8x32xf32, #tpu.memory_space<vmem>>, vector<8x32xf32>
    %170 = vector.broadcast %6 : vector<1x32xf32> to vector<8x32xf32>
    %171 = arith.mulf %169, %170 : vector<8x32xf32>
    %cst_38 = arith.constant dense<0.000000e+00> : vector<8xf32>
    %172 = vector.multi_reduction <add>, %171, %cst_38 [1] : vector<8x32xf32> to vector<8xf32>
    %173 = vector.shape_cast %172 : vector<8xf32> to vector<8x1xf32>
    %174 = arith.addf %168, %173 : vector<8x1xf32>
    %175 = vector.broadcast %7 : vector<1x1xf32> to vector<8x1xf32>
    %176 = arith.addf %174, %175 : vector<8x1xf32>
    %c0_39 = arith.constant 0 : index
    %c0_40 = arith.constant 0 : index
    %177 = vector.load %arg3[%c0_39, %c0_40] : memref<8x1xf32, #tpu.memory_space<vmem>>, vector<8x1xf32>
    tpu.vector_store %arg3[%c0_39, %c0_40], %176 {strides = array<i32>} : memref<8x1xf32, #tpu.memory_space<vmem>>, vector<8x1xf32>,
    return
  }
}

</mosaic_0001>

<llo_original>
// kernel: discriminator_forward.1
$region0: #{discriminator_forward.1}
  #allocation0 [shape = 'u32[]', space=smem, size = 0x4, offset = 0x4, fixed_abs, tag = 'smem constant byte address 0x4 - core index']
  #allocation1 [shape = 'u32[72,128]{1,0:T(1,128)}', space=vmem, size = 0x9000, scoped, tag = 'internal scratch']
  %s0 = inlined_call_operand.vmem [shape: f32[64,4], index: 0, kind: input, shape index: {}]
  %s1 = inlined_call_operand.vmem [shape: f32[8,32], index: 1, kind: input, shape index: {}]
  %s2 = inlined_call_operand.vmem [shape: f32[80,128], index: 2, kind: input, shape index: {}]
  %s3 = inlined_call_operand.vmem [shape: f32[8,1], index: 3, kind: output, shape index: {}]
  %s4 = sld [smem:[#allocation0]]
  $region22: #{discriminator_forward.1} parent=0
    _
  %s6 = ssub.s32 1, %s4
  %s7 = scalar_select 0, %s6, %s4
  // Predicated region
  $region2: #{discriminator_forward.1} parent=0 // pred_check
    _
  $region3: #{discriminator_forward.1} parent=0 // pred_check_branch
    %9 = sbr.rel (0) target = $region5
  $region4: #{discriminator_forward.1} parent=0 // pred_region
    _
  $region5: #{discriminator_forward.1} parent=0 // pred_fallthru
    _
  // Predicated region
  $region6: #{discriminator_forward.1} parent=0 // pred_check
    _
  $region7: #{discriminator_forward.1} parent=0 // pred_check_branch
    %11 = sbr.rel (0) target = $region9
  $region8: #{discriminator_forward.1} parent=0 // pred_region
    _
  $region9: #{discriminator_forward.1} parent=0 // pred_fallthru
    _
  // Predicated region
  $region10: #{discriminator_forward.1} parent=0 // pred_check
    _
  $region11: #{discriminator_forward.1} parent=0 // pred_check_branch
    %13 = sbr.rel (0) target = $region13
  $region12: #{discriminator_forward.1} parent=0 // pred_region
    _
  $region13: #{discriminator_forward.1} parent=0 // pred_fallthru
    _
  %v14 = vld [vmem:[%s2] sm:$0xff]
  %v15 = vld [vmem:[%s2 + $0x8] sm:$0xff]
  %v16 = vld [vmem:[%s2 + $0x10] sm:$0xff]
  %v17 = vld [vmem:[%s2 + $0x18] sm:$0xff]
  %v18 = vld [vmem:[%s2 + $0x20] sm:$0xff]
  %v19 = vld [vmem:[%s2 + $0x28] sm:$0xff]
  %v20 = vld [vmem:[%s2 + $0x30] sm:$0xff]
  %v21 = vld [vmem:[%s2 + $0x38] sm:$0xff]
  %v22 = vld [vmem:[%s2 + $0x40] sm:$0x1]
  %v23 = vld [vmem:[%s2 + $0x41] sm:$0x1]
  %v24 = vld [vmem:[%s2 + $0x48] sm:$0xf]
  %v25 = vld [vmem:[%s0] sm:$0xff]
  %v26 = vld [vmem:[%s0 + $0x8] sm:$0xff]
  %v27 = vld [vmem:[%s0 + $0x10] sm:$0xff]
  %v28 = vld [vmem:[%s0 + $0x18] sm:$0xff]
  %v29 = vld [vmem:[%s0 + $0x20] sm:$0xff]
  %v30 = vld [vmem:[%s0 + $0x28] sm:$0xff]
  %v31 = vld [vmem:[%s0 + $0x30] sm:$0xff]
  %v32 = vld [vmem:[%s0 + $0x38] sm:$0xff]
  %v33 = vperm.slane %v23, 0
  %vm34 = vcmask 31744
  %v36 = vsel %vm34, %v25, 0
  %v39 = vsel %vm34, %v26, 0
  %v42 = vsel %vm34, %v27, 0
  %v45 = vsel %vm34, %v28, 0
  %v48 = vsel %vm34, %v29, 0
  %v51 = vsel %vm34, %v30, 0
  %v54 = vsel %vm34, %v31, 0
  %v57 = vsel %vm34, %v32, 0
  %vm59 = vcmask 1043456
  %v61 = vsel %vm59, %v24, 0
  %63 = vmatpush.msra.mxu0 0.0
  %64 = vmatpush.msra.mxu0 0.0
  %65 = vmatpush.msra.mxu0 0.0
  %66 = vmatpush.msra.mxu0 0.0
  %67 = vmatpush.msra.mxu0 0.0
  %68 = vmatpush.msra.mxu0 0.0
  %69 = vmatpush.msra.mxu0 0.0
  %70 = vmatpush.msra.mxu0 0.0
  %71 = vmatpush.msra.mxu0 0.0
  %72 = vmatpush.msra.mxu0 0.0
  %73 = vmatpush.msra.mxu0 0.0
  %74 = vmatpush.msra.mxu0 0.0
  %75 = vmatpush.msra.mxu0 0.0
  %76 = vmatpush.msra.mxu0 0.0
  %77 = vmatpush.msra.mxu0 0.0
  %78 = vmatpush.msra.mxu0 %v61
  %79 = vmatmul.f32.gmra.mxu0 %v36
  %v80 = vpop.f32.mrf.mxu0
  %v81 = vadd.f32 %v33, %v80
  %82 = vmatmul.f32.gmra.mxu0 %v39
  %v83 = vpop.f32.mrf.mxu0
  %v84 = vadd.f32 %v33, %v83
  %85 = vmatmul.f32.gmra.mxu0 %v42
  %v86 = vpop.f32.mrf.mxu0
  %v87 = vadd.f32 %v33, %v86
  %88 = vmatmul.f32.gmra.mxu0 %v45
  %v89 = vpop.f32.mrf.mxu0
  %v90 = vadd.f32 %v33, %v89
  %91 = vmatmul.f32.gmra.mxu0 %v48
  %v92 = vpop.f32.mrf.mxu0
  %v93 = vadd.f32 %v33, %v92
  %94 = vmatmul.f32.gmra.mxu0 %v51
  %v95 = vpop.f32.mrf.mxu0
  %v96 = vadd.f32 %v33, %v95
  %97 = vmatmul.f32.gmra.mxu0 %v54
  %v98 = vpop.f32.mrf.mxu0
  %v99 = vadd.f32 %v33, %v98
  %100 = vmatmul.f32.gmra.mxu0 %v57
  %v101 = vpop.f32.mrf.mxu0
  %v102 = vadd.f32 %v33, %v101
  %103 = vdwg.mxu0
  %v104 = vmax.f32 %v81, 0.0
  %v105 = vmax.f32 %v84, 0.0
  %v106 = vmax.f32 %v87, 0.0
  %v107 = vmax.f32 %v90, 0.0
  %v108 = vmax.f32 %v93, 0.0
  %v109 = vmax.f32 %v96, 0.0
  %v110 = vmax.f32 %v99, 0.0
  %v111 = vmax.f32 %v102, 0.0
  %v112 = vperm.slane %v22, 0
  %vm113 = vcmask 261120
  %v115 = vsel %vm113, %v104, 0
  %v118 = vsel %vm113, %v105, 0
  %v121 = vsel %vm113, %v106, 0
  %v124 = vsel %vm113, %v107, 0
  %v127 = vsel %vm113, %v108, 0
  %v130 = vsel %vm113, %v109, 0
  %v133 = vsel %vm113, %v110, 0
  %v136 = vsel %vm113, %v111, 0
  %138 = vmatpush.msra.mxu0 0.0
  %139 = vmatpush.msra.mxu0 0.0
  %140 = vmatpush.msra.mxu0 0.0
  %141 = vmatpush.msra.mxu0 0.0
  %142 = vmatpush.msra.mxu0 0.0
  %143 = vmatpush.msra.mxu0 0.0
  %144 = vmatpush.msra.mxu0 0.0
  %145 = vmatpush.msra.mxu0 0.0
  %146 = vmatpush.msra.mxu0 0.0
  %147 = vmatpush.msra.mxu0 0.0
  %148 = vmatpush.msra.mxu0 0.0
  %149 = vmatpush.msra.mxu0 0.0
  %150 = vmatpush.msra.mxu0 %v17
  %151 = vmatpush.msra.mxu0 %v16
  %152 = vmatpush.msra.mxu0 %v15
  %153 = vmatpush.msra.mxu0 %v14
  %154 = vmatmul.f32.gmra.mxu0 %v115
  %v155 = vpop.f32.mrf.mxu0
  %v156 = vadd.f32 %v112, %v155
  %157 = vmatmul.f32.gmra.mxu0 %v118
  %v158 = vpop.f32.mrf.mxu0
  %v159 = vadd.f32 %v112, %v158
  %160 = vmatmul.f32.gmra.mxu0 %v121
  %v161 = vpop.f32.mrf.mxu0
  %v162 = vadd.f32 %v112, %v161
  %163 = vmatmul.f32.gmra.mxu0 %v124
  %v164 = vpop.f32.mrf.mxu0
  %v165 = vadd.f32 %v112, %v164
  %166 = vmatmul.f32.gmra.mxu0 %v127
  %v167 = vpop.f32.mrf.mxu0
  %v168 = vadd.f32 %v112, %v167
  %169 = vmatmul.f32.gmra.mxu0 %v130
  %v170 = vpop.f32.mrf.mxu0
  %v171 = vadd.f32 %v112, %v170
  %172 = vmatmul.f32.gmra.mxu0 %v133
  %v173 = vpop.f32.mrf.mxu0
  %v174 = vadd.f32 %v112, %v173
  %175 = vmatmul.f32.gmra.mxu0 %v136
  %v176 = vpop.f32.mrf.mxu0
  %v177 = vadd.f32 %v112, %v176
  %178 = vdwg.mxu0
  %v180 = vsel %vm113, 0.0, 0
  %182 = vmatpush.msra.mxu0 0.0
  %183 = vmatpush.msra.mxu0 0.0
  %184 = vmatpush.msra.mxu0 0.0
  %185 = vmatpush.msra.mxu0 0.0
  %186 = vmatpush.msra.mxu0 0.0
  %187 = vmatpush.msra.mxu0 0.0
  %188 = vmatpush.msra.mxu0 0.0
  %189 = vmatpush.msra.mxu0 0.0
  %190 = vmatpush.msra.mxu0 0.0
  %191 = vmatpush.msra.mxu0 0.0
  %192 = vmatpush.msra.mxu0 0.0
  %193 = vmatpush.msra.mxu0 0.0
  %194 = vmatpush.msra.mxu0 %v21
  %195 = vmatpush.msra.mxu0 %v20
  %196 = vmatpush.msra.mxu0 %v19
  %197 = vmatpush.msra.mxu0 %v18
  %198 = vmatmul.f32.gmra.mxu0 %v180
  %v199 = vpop.f32.mrf.mxu0
  %v200 = vadd.f32 0.0, %v199
  %201 = vdwg.mxu0
  %v202 = vadd.f32 %v156, %v200
  %v203 = vtanh.pop %v202
  %v204 = vmul.f32 %v203, 0.5
  %v205 = vadd.f32 %v204, 0.5
  %v206 = vmul.f32 %v205, 0.0
  %208 = vrot.lane.b32.xlu0 %v203, 32
  %v209 = vpop.permute.xlu0 %208
  %v211 = vmul.f32 %v205, %v209
  %213 = vrot.lane.b32.xlu0 %v211, 32
  %v214 = vpop.permute.xlu0 %213
  %v216 = vadd.f32 %v206, %v214
  %v217 = vtanh.pop %v216
  %219 = vrot.lane.b32.xlu0 %v217, 32
  %v220 = vpop.permute.xlu0 %219
  %v222 = vmul.f32 %v205, %v220
  %224 = vrot.lane.b32.xlu0 %v222, 64
  %v225 = vpop.permute.xlu0 %224
  %v226 = vsel %vm113, %v225, 0
  %228 = vmatpush.msra.mxu0 0.0
  %229 = vmatpush.msra.mxu0 0.0
  %230 = vmatpush.msra.mxu0 0.0
  %231 = vmatpush.msra.mxu0 0.0
  %232 = vmatpush.msra.mxu0 0.0
  %233 = vmatpush.msra.mxu0 0.0
  %234 = vmatpush.msra.mxu0 0.0
  %235 = vmatpush.msra.mxu0 0.0
  %236 = vmatpush.msra.mxu0 0.0
  %237 = vmatpush.msra.mxu0 0.0
  %238 = vmatpush.msra.mxu0 0.0
  %239 = vmatpush.msra.mxu0 0.0
  %240 = vmatpush.msra.mxu0 %v21
  %241 = vmatpush.msra.mxu0 %v20
  %242 = vmatpush.msra.mxu0 %v19
  %243 = vmatpush.msra.mxu0 %v18
  %244 = vmatmul.f32.gmra.mxu0 %v226
  %v245 = vpop.f32.mrf.mxu0
  %v246 = vadd.f32 0.0, %v245
  %247 = vdwg.mxu0
  %v248 = vadd.f32 %v159, %v246
  %v249 = vtanh.pop %v248
  %v250 = vmul.f32 %v249, 0.5
  %v251 = vadd.f32 %v250, 0.5
  %v252 = vmul.f32 %v251, %v216
  %254 = vrot.lane.b32.xlu0 %v249, 32
  %v255 = vpop.permute.xlu0 %254
  %v257 = vmul.f32 %v251, %v255
  %259 = vrot.lane.b32.xlu0 %v257, 32
  %v260 = vpop.permute.xlu0 %259
  %v262 = vadd.f32 %v252, %v260
  %v263 = vtanh.pop %v262
  %265 = vrot.lane.b32.xlu0 %v263, 32
  %v266 = vpop.permute.xlu0 %265
  %v268 = vmul.f32 %v251, %v266
  %270 = vrot.lane.b32.xlu0 %v268, 64
  %v271 = vpop.permute.xlu0 %270
  %v272 = vsel %vm113, %v271, 0
  %274 = vmatpush.msra.mxu0 0.0
  %275 = vmatpush.msra.mxu0 0.0
  %276 = vmatpush.msra.mxu0 0.0
  %277 = vmatpush.msra.mxu0 0.0
  %278 = vmatpush.msra.mxu0 0.0
  %279 = vmatpush.msra.mxu0 0.0
  %280 = vmatpush.msra.mxu0 0.0
  %281 = vmatpush.msra.mxu0 0.0
  %282 = vmatpush.msra.mxu0 0.0
  %283 = vmatpush.msra.mxu0 0.0
  %284 = vmatpush.msra.mxu0 0.0
  %285 = vmatpush.msra.mxu0 0.0
  %286 = vmatpush.msra.mxu0 %v21
  %287 = vmatpush.msra.mxu0 %v20
  %288 = vmatpush.msra.mxu0 %v19
  %289 = vmatpush.msra.mxu0 %v18
  %290 = vmatmul.f32.gmra.mxu0 %v272
  %v291 = vpop.f32.mrf.mxu0
  %v292 = vadd.f32 0.0, %v291
  %293 = vdwg.mxu0
  %v294 = vadd.f32 %v162, %v292
  %v295 = vtanh.pop %v294
  %v296 = vmul.f32 %v295, 0.5
  %v297 = vadd.f32 %v296, 0.5
  %v298 = vmul.f32 %v297, %v262
  %300 = vrot.lane.b32.xlu0 %v295, 32
  %v301 = vpop.permute.xlu0 %300
  %v303 = vmul.f32 %v297, %v301
  %305 = vrot.lane.b32.xlu0 %v303, 32
  %v306 = vpop.permute.xlu0 %305
  %v308 = vadd.f32 %v298, %v306
  %v309 = vtanh.pop %v308
  %311 = vrot.lane.b32.xlu0 %v309, 32
  %v312 = vpop.permute.xlu0 %311
  %v314 = vmul.f32 %v297, %v312
  %316 = vrot.lane.b32.xlu0 %v314, 64
  %v317 = vpop.permute.xlu0 %316
  %v318 = vsel %vm113, %v317, 0
  %320 = vmatpush.msra.mxu0 0.0
  %321 = vmatpush.msra.mxu0 0.0
  %322 = vmatpush.msra.mxu0 0.0
  %323 = vmatpush.msra.mxu0 0.0
  %324 = vmatpush.msra.mxu0 0.0
  %325 = vmatpush.msra.mxu0 0.0
  %326 = vmatpush.msra.mxu0 0.0
  %327 = vmatpush.msra.mxu0 0.0
  %328 = vmatpush.msra.mxu0 0.0
  %329 = vmatpush.msra.mxu0 0.0
  %330 = vmatpush.msra.mxu0 0.0
  %331 = vmatpush.msra.mxu0 0.0
  %332 = vmatpush.msra.mxu0 %v21
  %333 = vmatpush.msra.mxu0 %v20
  %334 = vmatpush.msra.mxu0 %v19
  %335 = vmatpush.msra.mxu0 %v18
  %336 = vmatmul.f32.gmra.mxu0 %v318
  %v337 = vpop.f32.mrf.mxu0
  %v338 = vadd.f32 0.0, %v337
  %339 = vdwg.mxu0
  %v340 = vadd.f32 %v165, %v338
  %v341 = vtanh.pop %v340
  %v342 = vmul.f32 %v341, 0.5
  %v343 = vadd.f32 %v342, 0.5
  %v344 = vmul.f32 %v343, %v308
  %346 = vrot.lane.b32.xlu0 %v341, 32
  %v347 = vpop.permute.xlu0 %346
  %v349 = vmul.f32 %v343, %v347
  %351 = vrot.lane.b32.xlu0 %v349, 32
  %v352 = vpop.permute.xlu0 %351
  %v354 = vadd.f32 %v344, %v352
  %v355 = vtanh.pop %v354
  %357 = vrot.lane.b32.xlu0 %v355, 32
  %v358 = vpop.permute.xlu0 %357
  %v360 = vmul.f32 %v343, %v358
  %362 = vrot.lane.b32.xlu0 %v360, 64
  %v363 = vpop.permute.xlu0 %362
  %v364 = vsel %vm113, %v363, 0
  %366 = vmatpush.msra.mxu0 0.0
  %367 = vmatpush.msra.mxu0 0.0
  %368 = vmatpush.msra.mxu0 0.0
  %369 = vmatpush.msra.mxu0 0.0
  %370 = vmatpush.msra.mxu0 0.0
  %371 = vmatpush.msra.mxu0 0.0
  %372 = vmatpush.msra.mxu0 0.0
  %373 = vmatpush.msra.mxu0 0.0
  %374 = vmatpush.msra.mxu0 0.0
  %375 = vmatpush.msra.mxu0 0.0
  %376 = vmatpush.msra.mxu0 0.0
  %377 = vmatpush.msra.mxu0 0.0
  %378 = vmatpush.msra.mxu0 %v21
  %379 = vmatpush.msra.mxu0 %v20
  %380 = vmatpush.msra.mxu0 %v19
  %381 = vmatpush.msra.mxu0 %v18
  %382 = vmatmul.f32.gmra.mxu0 %v364
  %v383 = vpop.f32.mrf.mxu0
  %v384 = vadd.f32 0.0, %v383
  %385 = vdwg.mxu0
  %v386 = vadd.f32 %v168, %v384
  %v387 = vtanh.pop %v386
  %v388 = vmul.f32 %v387, 0.5
  %v389 = vadd.f32 %v388, 0.5
  %v390 = vmul.f32 %v389, %v354
  %392 = vrot.lane.b32.xlu0 %v387, 32
  %v393 = vpop.permute.xlu0 %392
  %v395 = vmul.f32 %v389, %v393
  %397 = vrot.lane.b32.xlu0 %v395, 32
  %v398 = vpop.permute.xlu0 %397
  %v400 = vadd.f32 %v390, %v398
  %v401 = vtanh.pop %v400
  %403 = vrot.lane.b32.xlu0 %v401, 32
  %v404 = vpop.permute.xlu0 %403
  %v406 = vmul.f32 %v389, %v404
  %408 = vrot.lane.b32.xlu0 %v406, 64
  %v409 = vpop.permute.xlu0 %408
  %v410 = vsel %vm113, %v409, 0
  %412 = vmatpush.msra.mxu0 0.0
  %413 = vmatpush.msra.mxu0 0.0
  %414 = vmatpush.msra.mxu0 0.0
  %415 = vmatpush.msra.mxu0 0.0
  %416 = vmatpush.msra.mxu0 0.0
  %417 = vmatpush.msra.mxu0 0.0
  %418 = vmatpush.msra.mxu0 0.0
  %419 = vmatpush.msra.mxu0 0.0
  %420 = vmatpush.msra.mxu0 0.0
  %421 = vmatpush.msra.mxu0 0.0
  %422 = vmatpush.msra.mxu0 0.0
  %423 = vmatpush.msra.mxu0 0.0
  %424 = vmatpush.msra.mxu0 %v21
  %425 = vmatpush.msra.mxu0 %v20
  %426 = vmatpush.msra.mxu0 %v19
  %427 = vmatpush.msra.mxu0 %v18
  %428 = vmatmul.f32.gmra.mxu0 %v410
  %v429 = vpop.f32.mrf.mxu0
  %v430 = vadd.f32 0.0, %v429
  %431 = vdwg.mxu0
  %v432 = vadd.f32 %v171, %v430
  %v433 = vtanh.pop %v432
  %v434 = vmul.f32 %v433, 0.5
  %v435 = vadd.f32 %v434, 0.5
  %v436 = vmul.f32 %v435, %v400
  %438 = vrot.lane.b32.xlu0 %v433, 32
  %v439 = vpop.permute.xlu0 %438
  %v441 = vmul.f32 %v435, %v439
  %443 = vrot.lane.b32.xlu0 %v441, 32
  %v444 = vpop.permute.xlu0 %443
  %v446 = vadd.f32 %v436, %v444
  %v447 = vtanh.pop %v446
  %449 = vrot.lane.b32.xlu0 %v447, 32
  %v450 = vpop.permute.xlu0 %449
  %v452 = vmul.f32 %v435, %v450
  %454 = vrot.lane.b32.xlu0 %v452, 64
  %v455 = vpop.permute.xlu0 %454
  %v456 = vsel %vm113, %v455, 0
  %458 = vmatpush.msra.mxu0 0.0
  %459 = vmatpush.msra.mxu0 0.0
  %460 = vmatpush.msra.mxu0 0.0
  %461 = vmatpush.msra.mxu0 0.0
  %462 = vmatpush.msra.mxu0 0.0
  %463 = vmatpush.msra.mxu0 0.0
  %464 = vmatpush.msra.mxu0 0.0
  %465 = vmatpush.msra.mxu0 0.0
  %466 = vmatpush.msra.mxu0 0.0
  %467 = vmatpush.msra.mxu0 0.0
  %468 = vmatpush.msra.mxu0 0.0
  %469 = vmatpush.msra.mxu0 0.0
  %470 = vmatpush.msra.mxu0 %v21
  %471 = vmatpush.msra.mxu0 %v20
  %472 = vmatpush.msra.mxu0 %v19
  %473 = vmatpush.msra.mxu0 %v18
  %474 = vmatmul.f32.gmra.mxu0 %v456
  %v475 = vpop.f32.mrf.mxu0
  %v476 = vadd.f32 0.0, %v475
  %477 = vdwg.mxu0
  %v478 = vadd.f32 %v174, %v476
  %v479 = vtanh.pop %v478
  %v480 = vmul.f32 %v479, 0.5
  %v481 = vadd.f32 %v480, 0.5
  %v482 = vmul.f32 %v481, %v446
  %484 = vrot.lane.b32.xlu0 %v479, 32
  %v485 = vpop.permute.xlu0 %484
  %v487 = vmul.f32 %v481, %v485
  %489 = vrot.lane.b32.xlu0 %v487, 32
  %v490 = vpop.permute.xlu0 %489
  %v492 = vadd.f32 %v482, %v490
  %v493 = vtanh.pop %v492
  %495 = vrot.lane.b32.xlu0 %v493, 32
  %v496 = vpop.permute.xlu0 %495
  %v498 = vmul.f32 %v481, %v496
  %500 = vrot.lane.b32.xlu0 %v498, 64
  %v501 = vpop.permute.xlu0 %500
  %v502 = vsel %vm113, %v501, 0
  %504 = vmatpush.msra.mxu0 0.0
  %505 = vmatpush.msra.mxu0 0.0
  %506 = vmatpush.msra.mxu0 0.0
  %507 = vmatpush.msra.mxu0 0.0
  %508 = vmatpush.msra.mxu0 0.0
  %509 = vmatpush.msra.mxu0 0.0
  %510 = vmatpush.msra.mxu0 0.0
  %511 = vmatpush.msra.mxu0 0.0
  %512 = vmatpush.msra.mxu0 0.0
  %513 = vmatpush.msra.mxu0 0.0
  %514 = vmatpush.msra.mxu0 0.0
  %515 = vmatpush.msra.mxu0 0.0
  %516 = vmatpush.msra.mxu0 %v21
  %517 = vmatpush.msra.mxu0 %v20
  %518 = vmatpush.msra.mxu0 %v19
  %519 = vmatpush.msra.mxu0 %v18
  %520 = vmatmul.f32.gmra.mxu0 %v502
  %v521 = vpop.f32.mrf.mxu0
  %v522 = vadd.f32 0.0, %v521
  %523 = vdwg.mxu0
  %v524 = vadd.f32 %v177, %v522
  %v525 = vtanh.pop %v524
  %v526 = vmul.f32 %v525, 0.5
  %v527 = vadd.f32 %v526, 0.5
  %v528 = vmul.f32 %v527, %v492
  %530 = vrot.lane.b32.xlu0 %v525, 32
  %v531 = vpop.permute.xlu0 %530
  %v533 = vmul.f32 %v527, %v531
  %535 = vrot.lane.b32.xlu0 %v533, 32
  %v536 = vpop.permute.xlu0 %535
  %v538 = vadd.f32 %v528, %v536
  %v539 = vtanh.pop %v538
  %541 = vrot.lane.b32.xlu0 %v539, 32
  %v542 = vpop.permute.xlu0 %541
  %v544 = vmul.f32 %v527, %v542
  %546 = vrot.lane.b32.xlu0 %v33, 32
  %v547 = vpop.permute.xlu0 %546
  %v549 = vmul.f32 %v544, %v547
  %551 = vrot.lane.b32.xlu0 %v549, 64
  %v552 = vpop.permute.xlu0 %551
  %v554 = vsel %vm113, %v552, 0.0
  %555 = vadd.xlane.f32.xlu0 %v554
  %v556 = vpop.xlane.xlu0 %555
  %v557 = vld [vmem:[%s1] sm:$0xff]
  %558 = vrot.lane.b32.xlu0 %v33, 64
  %v559 = vpop.permute.xlu0 %558
  %v561 = vmul.f32 %v557, %v559
  %v562 = vsel %vm113, %v561, 0.0
  %563 = vadd.xlane.f32.xlu0 %v562
  %v564 = vpop.xlane.xlu0 %563
  %v565 = vadd.f32 %v556, %v564
  %v566 = vadd.f32 %v565, %v33
  %568 = vrot.lane.b32.xlu0 %v566, 32
  %v569 = vpop.permute.xlu0 %568
  %vm571 = vcmask 7168
  %572 = vst.msk [vmem:[%s3] sm:$0xff] %vm571, %v569
  // Predicated region
  $region14: #{discriminator_forward.1} parent=0 // pred_check
    _
  $region15: #{discriminator_forward.1} parent=0 // pred_check_branch
    %574 = sbr.rel (0) target = $region17
  $region16: #{discriminator_forward.1} parent=0 // pred_region
    _
  $region17: #{discriminator_forward.1} parent=0 // pred_fallthru
    _
  // Predicated region
  $region18: #{discriminator_forward.1} parent=0 // pred_check
    _
  $region19: #{discriminator_forward.1} parent=0 // pred_check_branch
    %576 = sbr.rel (0) target = $region21
  $region20: #{discriminator_forward.1} parent=0 // pred_region
    _
  $region21: #{discriminator_forward.1} parent=0 // pred_fallthru
    _

</llo_original>
